<compile_context>
chip_gen: v6e
topology: v6e:2x2x1
jax: 0.10.0
libtpu: 0.0.40
codegen_flags: <defaults>
</compile_context>

<pallas_src>
import functools

import jax
import jax.numpy as jnp
from jax.experimental import pallas as pl
from jax.experimental.pallas import tpu as pltpu


# ----------------------------------------------------------------------------
# Kernels
# ----------------------------------------------------------------------------
def _style_proj_kernel(cp, s_ref, wghT_ref, bgh_ref, g_ref, hcat_ref):
    """Per-batch style projections: [g | h] = s @ [Wg^T | Wh^T] + [bg | bh],
    then hcat = [h | h*h] (single fused MXU pass over style)."""
    s = s_ref[0]                                              # (Ns, Cp) f32
    gh = jnp.dot(s, wghT_ref[...],
                 preferred_element_type=jnp.float32) + bgh_ref[...]
    g = gh[:, :cp]
    hh = gh[:, cp:]
    g_ref[0] = g
    hcat_ref[0, :, :cp] = hh
    hcat_ref[0, :, cp:] = hh * hh


def _aattn_kernel(cp, c_ref, cmean_ref, crstd_ref, g_ref, hcat_ref,
                  wfT_ref, bf_ref, woT_ref, bo_ref, o_ref):
    """One (batch, query-tile) step of AdaAttN."""
    c = c_ref[0]                                              # (tq, Cp) f32

    # f = content @ Wf^T + bf
    f = jnp.dot(c, wfT_ref[...],
                preferred_element_type=jnp.float32) + bf_ref[...]

    # scores = f @ g^T, contracting the channel axes directly (no transpose
    # materialized in the inner loop).
    scores = jax.lax.dot_general(
        f, g_ref[0],
        dimension_numbers=(((1,), (1,)), ((), ())),
        preferred_element_type=jnp.float32)                   # (tq, Ns)

    # Softmax numerator only; normalization is deferred past the matmul so the
    # (tq, Ns) tile never sees a broadcast multiply.
    m = jnp.max(scores, axis=-1, keepdims=True)
    e = jnp.exp(scores - m)
    denom = jnp.sum(e, axis=-1, keepdims=True)

    # [sum_w h | sum_w h^2] with a single matmul against the fused operand,
    # then scale by 1/denom.  Exact division: the sq - mean^2 cancellation is
    # precision-critical, approx reciprocal is not accurate enough here.
    ms = jnp.dot(e, hcat_ref[0], preferred_element_type=jnp.float32)
    ms = ms / denom                                           # (tq, 2*Cp)
    mean = ms[:, :cp]
    sq = ms[:, cp:]
    std = jnp.sqrt(jnp.maximum(sq - mean * mean, 0.0))

    # mean_variance_norm(content) with precomputed per-channel stats.
    normed = (c - cmean_ref[0]) * crstd_ref[0]

    o = std * normed + mean
    o = jnp.dot(o, woT_ref[...],
                preferred_element_type=jnp.float32) + bo_ref[...]
    o_ref[0] = o + c                                          # residual


# ----------------------------------------------------------------------------
# Wrapper helpers
# ----------------------------------------------------------------------------
def _tpu_vmem_bytes():
    try:
        return int(pltpu.get_tpu_info().vmem_capacity_bytes)
    except Exception:
        return 128 * 1024 * 1024      # v5e/v6e-like default when HW query fails


def _pick_tq(nc, max_tq):
    """Largest divisor of nc that is a multiple of 8 and <= max_tq, preferring
    multiples of 128 (full MXU M tiles) and >= 2 tiles (v7x megacore)."""
    cands = [t for t in range(8, min(nc, max_tq) + 1, 8) if nc % t == 0]
    if not cands:
        return nc                     # block == full dim is always legal
    for pool in ([t for t in cands if t % 128 == 0 and nc // t >= 2],
                 [t for t in cands if nc // t >= 2],
                 cands):
        if pool:
            return max(pool)
    return nc


# ----------------------------------------------------------------------------
# Wrapper
# ----------------------------------------------------------------------------
def aattn_pallas(content, style, params):
    """content, style: NCHW float32. Returns NCHW float32."""
    b, C, h, w = content.shape
    _, _, hg, wgd = style.shape
    Nc, Ns = h * w, hg * wgd
    Cp = ((C + 127) // 128) * 128
    eps = 1e-5

    wf, bf, wg_, bg_, wh, bh, wo, bo = params

    def pad_wT(W):        # (C,C) -> padded, pre-transposed f32 (Cp, Cp)
        Wp = jnp.zeros((Cp, Cp), jnp.float32).at[:C, :C].set(W)
        return Wp.T

    def pad_b(bvec):      # (1,C) -> (1,Cp) f32
        return jnp.zeros((1, Cp), jnp.float32).at[:, :C].set(bvec)

    wfT, woT = pad_wT(wf), pad_wT(wo)
    bfp, bop = pad_b(bf), pad_b(bo)
    # fused style weight/bias: one (Cp, 2*Cp) operand -> one matmul in pre-pass
    wghT = jnp.concatenate([pad_wT(wg_), pad_wT(wh)], axis=1)       # (Cp, 2Cp)
    bghp = jnp.concatenate([pad_b(bg_), pad_b(bh)], axis=1)         # (1, 2Cp)

    # channels-last flattened, zero-padded channel (lane) dim
    c_flat = jnp.zeros((b, Nc, Cp), jnp.float32).at[:, :, :C].set(
        content.reshape(b, C, Nc).transpose(0, 2, 1))
    s_flat = jnp.zeros((b, Ns, Cp), jnp.float32).at[:, :, :C].set(
        style.reshape(b, C, Ns).transpose(0, 2, 1))

    # content per-channel mean / rstd from the original NCHW tensor
    # (no extra passes over the padded array); unbiased var like torch .var.
    c_mean_c = jnp.mean(content, axis=(2, 3))                       # (b, C)
    c_var_c = jnp.var(content, axis=(2, 3), ddof=1)                 # (b, C)
    c_rstd_c = jax.lax.rsqrt(c_var_c + eps)
    c_mean = jnp.zeros((b, 1, Cp), jnp.float32).at[:, 0, :C].set(c_mean_c)
    c_rstd = jnp.zeros((b, 1, Cp), jnp.float32).at[:, 0, :C].set(c_rstd_c)

    vmem_cap = _tpu_vmem_bytes()
    vmem_limit = min(int(vmem_cap * 0.85), 110 * 1024 * 1024)
    max_tq = 256 if vmem_cap <= 64 * 1024 * 1024 else 512

    # -- pre-pass: per-batch style projections g and [h | h^2] ---------------
    g_s, hcat_s = pl.pallas_call(
        functools.partial(_style_proj_kernel, Cp),
        out_shape=(jax.ShapeDtypeStruct((b, Ns, Cp), jnp.float32),
                   jax.ShapeDtypeStruct((b, Ns, 2 * Cp), jnp.float32)),
        grid=(b,),
        in_specs=[
            pl.BlockSpec((1, Ns, Cp), lambda i: (i, 0, 0)),
            pl.BlockSpec((Cp, 2 * Cp), lambda i: (0, 0)),
            pl.BlockSpec((1, 2 * Cp), lambda i: (0, 0)),
        ],
        out_specs=[
            pl.BlockSpec((1, Ns, Cp), lambda i: (i, 0, 0)),
            pl.BlockSpec((1, Ns, 2 * Cp), lambda i: (i, 0, 0)),
        ],
        compiler_params=pltpu.CompilerParams(
            dimension_semantics=("parallel",),
            vmem_limit_bytes=vmem_limit),
    )(s_flat, wghT, bghp)

    # -- main attention kernel, tiled over (batch, query tiles) --------------
    tq = _pick_tq(Nc, max_tq)
    n_q = Nc // tq

    out = pl.pallas_call(
        functools.partial(_aattn_kernel, Cp),
        out_shape=jax.ShapeDtypeStruct((b, Nc, Cp), jnp.float32),
        grid=(b, n_q),
        in_specs=[
            pl.BlockSpec((1, tq, Cp), lambda ib, iq: (ib, iq, 0)),      # content
            pl.BlockSpec((1, 1, Cp), lambda ib, iq: (ib, 0, 0)),        # c_mean
            pl.BlockSpec((1, 1, Cp), lambda ib, iq: (ib, 0, 0)),        # c_rstd
            pl.BlockSpec((1, Ns, Cp), lambda ib, iq: (ib, 0, 0)),       # g
            pl.BlockSpec((1, Ns, 2 * Cp), lambda ib, iq: (ib, 0, 0)),   # [h|h^2]
            pl.BlockSpec((Cp, Cp), lambda ib, iq: (0, 0)),              # Wf^T
            pl.BlockSpec((1, Cp), lambda ib, iq: (0, 0)),               # bf
            pl.BlockSpec((Cp, Cp), lambda ib, iq: (0, 0)),              # Wo^T
            pl.BlockSpec((1, Cp), lambda ib, iq: (0, 0)),               # bo
        ],
        out_specs=pl.BlockSpec((1, tq, Cp), lambda ib, iq: (ib, iq, 0)),
        compiler_params=pltpu.CompilerParams(
            dimension_semantics=("parallel", "parallel"),
            vmem_limit_bytes=vmem_limit),
    )(c_flat, c_mean, c_rstd, g_s, hcat_s, wfT, bfp, woT, bop)

    out = out[:, :, :C]                         # drop channel padding (exact)
    return out.transpose(0, 2, 1).reshape(b, C, h, w)


# ----------------------------------------------------------------------------
# Pure-JAX reference (mirrors the PyTorch forward, NCHW)
# ----------------------------------------------------------------------------
def aattn_ref(content, style, params):
    wf, bf, wg_, bg_, wh, bh, wo, bo = params

    def conv1x1(x, W, bvec):
        return jnp.einsum('oc,bchw->bohw', W, x) + bvec.reshape(1, -1, 1, 1)

    F_ = conv1x1(content, wf, bf)
    G_ = conv1x1(style, wg_, bg_)
    H_ = conv1x1(style, wh, bh)
    b, C, hg, wgd = G_.shape
    G_ = G_.reshape(b, C, hg * wgd)
    style_flat = H_.reshape(b, C, hg * wgd).transpose(0, 2, 1)
    b, C, h, w = F_.shape
    Ff = F_.reshape(b, C, h * w).transpose(0, 2, 1)
    S = jnp.einsum('bnc,bcm->bnm', Ff, G_)
    S = jax.nn.softmax(S, axis=-1)
    mean = jnp.einsum('bnm,bmc->bnc', S, style_flat)
    sq = jnp.einsum('bnm,bmc->bnc', S, style_flat ** 2)
    std = jnp.sqrt(jnp.maximum(sq - mean ** 2, 0.0))
    mean = mean.reshape(b, h, w, C).transpose(0, 3, 1, 2)
    std = std.reshape(b, h, w, C).transpose(0, 3, 1, 2)

    cf = content.reshape(b, C, -1)
    c_mean = cf.mean(axis=2).reshape(b, C, 1, 1)
    c_std = jnp.sqrt(cf.var(axis=2, ddof=1) + 1e-5).reshape(b, C, 1, 1)
    normed = (content - c_mean) / c_std

    O = std * normed + mean
    O = conv1x1(O, wo, bo)
    return O + content


if __name__ == "__main__":
    key = jax.random.PRNGKey(0)
    b, C, h, w = 2, 32, 8, 8        # content spatial 8x8
    hg, wg = 8, 8                   # style spatial 8x8

    keys = jax.random.split(key, 11)
    content = jax.random.normal(keys[0], (b, C, h, w), dtype=jnp.float32)
    style = jax.random.normal(keys[1], (b, C, hg, wg), dtype=jnp.float32)

    scale = 1.0 / jnp.sqrt(jnp.float32(C))
    mk_w = lambda k: (jax.random.normal(k, (C, C), dtype=jnp.float32) * scale)
    mk_b = lambda k: (jax.random.normal(k, (1, C), dtype=jnp.float32) * 0.1)
    params = (mk_w(keys[2]), mk_b(keys[3]),   # f
              mk_w(keys[4]), mk_b(keys[5]),   # g
              mk_w(keys[6]), mk_b(keys[7]),   # h
              mk_w(keys[8]), mk_b(keys[9]))   # out_conv

    out = aattn_pallas(content, style, params)
    out = jax.block_until_ready(out)

    ref = aattn_ref(content, style, params)
    assert out.shape == (b, C, h, w)
    max_err = float(jnp.max(jnp.abs(out - ref)))
    assert jnp.allclose(out, ref, rtol=2e-2, atol=2e-2), max_err

    print("KERNEL_OK")
</pallas_src>

<mosaic_0001>
module attributes {stable_mosaic.version = 11 : i64} {
  func.func @_style_proj_kernel(%arg0: i32, %arg1: memref<1x64x128xf32, #tpu.memory_space<vmem>>, %arg2: memref<128x256xf32, #tpu.memory_space<vmem>>, %arg3: memref<1x256xf32, #tpu.memory_space<vmem>>, %arg4: memref<1x64x128xf32, #tpu.memory_space<vmem>>, %arg5: memref<1x64x256xf32, #tpu.memory_space<vmem>>) attributes {dimension_semantics = [#tpu.dimension_semantics<parallel>], iteration_bounds = array<i64: 2>, scalar_prefetch = 0 : i64, scratch_operands = 0 : i64, tpu.core_type = #tpu.core_type<tc>, window_params = [{transform_indices = @transform_0, window_bounds = array<i64: 1, 64, 128>}, {pipeline_mode = #tpu.pipeline_mode<synchronous>, transform_indices = @transform_1, window_bounds = array<i64: 128, 256>}, {pipeline_mode = #tpu.pipeline_mode<synchronous>, transform_indices = @transform_2, window_bounds = array<i64: 1, 256>}, {transform_indices = @transform_3, window_bounds = array<i64: 1, 64, 128>}, {transform_indices = @transform_4, window_bounds = array<i64: 1, 64, 256>}]} {
    %c0 = arith.constant 0 : index
    %c0_0 = arith.constant 0 : index
    %c0_1 = arith.constant 0 : index
    %0 = vector.load %arg1[%c0, %c0_0, %c0_1] : memref<1x64x128xf32, #tpu.memory_space<vmem>>, vector<1x64x128xf32>
    %1 = vector.shape_cast %0 : vector<1x64x128xf32> to vector<64x128xf32>
    %c0_2 = arith.constant 0 : index
    %c0_3 = arith.constant 0 : index
    %2 = vector.load %arg2[%c0_2, %c0_3] : memref<128x256xf32, #tpu.memory_space<vmem>>, vector<128x256xf32>
    %cst = arith.constant dense<0.000000e+00> : vector<64x256xf32>
    %3 = tpu.matmul %1, %2, %cst {dimension_numbers = #tpu.dot_dimension_numbers<[1], [0], [0], [1], [0, 0, 1, 1], [], []>} : vector<64x128xf32>, vector<128x256xf32>, vector<64x256xf32> -> vector<64x256xf32>
    %c0_4 = arith.constant 0 : index
    %c0_5 = arith.constant 0 : index
    %4 = vector.load %arg3[%c0_4, %c0_5] : memref<1x256xf32, #tpu.memory_space<vmem>>, vector<1x256xf32>
    %5 = vector.broadcast %4 : vector<1x256xf32> to vector<64x256xf32>
    %6 = arith.addf %3, %5 : vector<64x256xf32>
    %7 = vector.extract_strided_slice %6 {offsets = [0, 0], sizes = [64, 128], strides = [1, 1]} : vector<64x256xf32> to vector<64x128xf32>
    %8 = vector.extract_strided_slice %6 {offsets = [0, 128], sizes = [64, 128], strides = [1, 1]} : vector<64x256xf32> to vector<64x128xf32>
    %c0_6 = arith.constant 0 : index
    %c0_7 = arith.constant 0 : index
    %c0_8 = arith.constant 0 : index
    %9 = vector.load %arg4[%c0_6, %c0_7, %c0_8] : memref<1x64x128xf32, #tpu.memory_space<vmem>>, vector<1x64x128xf32>
    %10 = vector.shape_cast %9 : vector<1x64x128xf32> to vector<64x128xf32>
    %11 = vector.shape_cast %7 : vector<64x128xf32> to vector<1x64x128xf32>
    tpu.vector_store %arg4[%c0_6, %c0_7, %c0_8], %11 {strides = array<i32>} : memref<1x64x128xf32, #tpu.memory_space<vmem>>, vector<1x64x128xf32>,
    %c0_9 = arith.constant 0 : index
    %c0_10 = arith.constant 0 : index
    %c0_11 = arith.constant 0 : index
    %12 = vector.load %arg5[%c0_9, %c0_10, %c0_11] : memref<1x64x256xf32, #tpu.memory_space<vmem>>, vector<1x64x128xf32>
    %13 = vector.shape_cast %12 : vector<1x64x128xf32> to vector<64x128xf32>
    %14 = vector.shape_cast %8 : vector<64x128xf32> to vector<1x64x128xf32>
    tpu.vector_store %arg5[%c0_9, %c0_10, %c0_11], %14 {strides = array<i32>} : memref<1x64x256xf32, #tpu.memory_space<vmem>>, vector<1x64x128xf32>,
    %15 = arith.mulf %8, %8 : vector<64x128xf32>
    %c0_12 = arith.constant 0 : index
    %c0_13 = arith.constant 0 : index
    %c128 = arith.constant 128 : index
    %16 = vector.load %arg5[%c0_12, %c0_13, %c128] : memref<1x64x256xf32, #tpu.memory_space<vmem>>, vector<1x64x128xf32>
    %17 = vector.shape_cast %16 : vector<1x64x128xf32> to vector<64x128xf32>
    %18 = vector.shape_cast %15 : vector<64x128xf32> to vector<1x64x128xf32>
    tpu.vector_store %arg5[%c0_12, %c0_13, %c128], %18 {strides = array<i32>} : memref<1x64x256xf32, #tpu.memory_space<vmem>>, vector<1x64x128xf32>,
    return
  }
  func.func @transform_0(%arg0: i32) -> (i32, i32, i32) {
    %c0_i32 = arith.constant 0 : i32
    %c0_i32_0 = arith.constant 0 : i32
    %c0_i32_1 = arith.constant 0 : i32
    return %arg0, %c0_i32, %c0_i32_0 : i32, i32, i32
  }
  func.func @transform_1(%arg0: i32) -> (i32, i32) {
    %c0_i32 = arith.constant 0 : i32
    %c0_i32_0 = arith.constant 0 : i32
    %c0_i32_1 = arith.constant 0 : i32
    return %c0_i32, %c0_i32_0 : i32, i32
  }
  func.func @transform_2(%arg0: i32) -> (i32, i32) {
    %c0_i32 = arith.constant 0 : i32
    %c0_i32_0 = arith.constant 0 : i32
    %c0_i32_1 = arith.constant 0 : i32
    return %c0_i32, %c0_i32_0 : i32, i32
  }
  func.func @transform_3(%arg0: i32) -> (i32, i32, i32) {
    %c0_i32 = arith.constant 0 : i32
    %c0_i32_0 = arith.constant 0 : i32
    %c0_i32_1 = arith.constant 0 : i32
    return %arg0, %c0_i32, %c0_i32_0 : i32, i32, i32
  }
  func.func @transform_4(%arg0: i32) -> (i32, i32, i32) {
    %c0_i32 = arith.constant 0 : i32
    %c0_i32_0 = arith.constant 0 : i32
    %c0_i32_1 = arith.constant 0 : i32
    return %arg0, %c0_i32, %c0_i32_0 : i32, i32, i32
  }
}

</mosaic_0001>

<llo_original>
// kernel: tpu_custom_call.1
$region0: #{tpu_custom_call.1}
  #allocation0 [shape = 'u32[]', space=smem, size = 0x4, offset = 0x4, fixed_abs, tag = 'smem constant byte address 0x4 - core index']
  #allocation1 [shape = 'u32[144,128]{1,0:T(1,128)}', space=vmem, size = 0x12000, scoped, tag = 'internal scratch']
  %s0 = inlined_call_operand.hbm [shape: f32[2,64,128], index: 0, kind: input, shape index: {}]
  %s1 = inlined_call_operand.hbm [shape: f32[128,256], index: 1, kind: input, shape index: {}]
  %s2 = inlined_call_operand.vmem [shape: f32[1,256], index: 2, kind: input, shape index: {}]
  %s3 = inlined_call_operand.hbm [shape: f32[2,64,128], index: 3, kind: output, shape index: {0}]
  %s4 = inlined_call_operand.hbm [shape: f32[2,64,256], index: 4, kind: output, shape index: {1}]
  %5 = xla_tuple %s3, %s4
  %s6 = sld [smem:[#allocation0]]
  $region61: #{tpu_custom_call.1} parent=0
    _
  %s8 = ssub.s32 1, %s6
  %s9 = scalar_select 0, %s8, %s6
  $region1: #{tpu_custom_call.1} parent=0
    #allocation2 [shape = 'u8[65536]{0}', space=vmem, size = 0x10000, scoped, tag = 'input window, operand 0']
    #allocation3 [shape = 's32[2]{0}', space=sflag, size = 0x8, scoped, tag = 'scoped memory for tpu_custom_call.1']
    #allocation4 [shape = 's32[2]{0}', space=sflag, size = 0x8, scoped, tag = 'scoped memory for tpu_custom_call.1']
    #allocation5 [shape = 'u8[131072]{0}', space=vmem, size = 0x20000, scoped, tag = 'input window, operand 1, single buffered']
    #allocation6 [shape = 's32[1]{0}', space=sflag, size = 0x4, scoped, tag = 'scoped memory for tpu_custom_call.1']
    #allocation7 [shape = 'u8[65536]{0}', space=vmem, size = 0x10000, scoped, tag = 'output window, operand 0']
    #allocation8 [shape = 'u8[131072]{0}', space=vmem, size = 0x20000, scoped, tag = 'output window, operand 1']
    #allocation9 [shape = 's32[2]{0}', space=sflag, size = 0x8, scoped, tag = 'scoped memory for tpu_custom_call.1']
    %10 = vsyncpa [#allocation3], 0
    %s11 = scalar_lea.sflag [#allocation3], 1
    %12 = vsyncpa %s11, 0
    %13 = vsyncpa [#allocation6], 0
    %14 = vsyncpa [#allocation4], 0
    %s15 = scalar_lea.sflag [#allocation4], 1
    %16 = vsyncpa %s15, 0
    %17 = vsyncpa [#allocation9], 0
    %s18 = scalar_lea.sflag [#allocation9], 1
    %19 = vsyncpa %s18, 0
    loop: start=0, step=1, limit=4
    $region2: #{tpu_custom_call.1} parent=1 // loop_pre_header
      _
    $region3: #{tpu_custom_call.1} parent=1 // loop_header
      %s21 = sphi 0, %s25
      %p22 = scmp.ge.s32.totalorder %s21, 4
      %s31 = sphi 0, %s33
      %s34 = sphi 0, %s31
      %s35 = sphi 0, %s34
      %s51 = sphi 0, %s35
      %s55 = sphi 0, %s55
      %s57 = sphi 0, %s55
      %s58 = sphi 0, %s57
      %s72 = sphi 0, %s58
      %s76 = sphi 0, %s76
      %s78 = sphi 0, %s76
      %s79 = sphi 0, %s78
      %s93 = sphi 0, %s79
      %s99 = sphi 0, %s101
      %s102 = sphi 0, %s99
      %s103 = sphi 0, %s102
      %s119 = sphi 0, %s103
      %s125 = sphi 0, %s127
      %s128 = sphi 0, %s125
      %s129 = sphi 0, %s128
      %s145 = sphi 0, %s129
    $region4: #{tpu_custom_call.1} parent=1 // loop_header_branch
      %24 = sbr.rel (%p22) target = $region8
    $region5: #{tpu_custom_call.1} parent=1 // loop_body
      %s26 = ssub.s32 %s21, 1
      %s27 = ssub.s32 %s21, 2
      %s28 = sadd.s32 %s21, 1
      %s29 = ssub.s32 %s21, %s28
      %p30 = scmp.eq.s32.totalorder %s29, 0
      %s32 = sadd.s32 %s31, 1
      %s33 = scalar_select %p30, %s31, %s32
      %p36 = pneg %p30
      %p37 = scmp.eq.s32.totalorder %s21, 1
      %p38 = por %p36, %p37
      %p39 = scmp.ne.s32.totalorder %s31, %s34
      %p40 = scmp.eq.s32.totalorder %s21, 0
      %p41 = por %p39, %p40
      %p42 = scmp.ne.s32.totalorder %s31, %s34
      %p43 = scmp.eq.s32.totalorder %s26, 1
      %p44 = por %p42, %p43
      %p45 = scmp.ne.s32.totalorder %s34, %s35
      %p46 = scmp.eq.s32.totalorder %s26, 0
      %p47 = por %p45, %p46
      %p48 = scmp.ne.s32.totalorder %s34, %s35
      %p49 = scmp.eq.s32.totalorder %s27, 1
      %p50 = por %p48, %p49
      %p52 = scmp.ne.s32.totalorder %s35, %s51
      %p53 = scmp.eq.s32.totalorder %s27, 0
      %p54 = por %p52, %p53
      %s56 = sadd.s32 %s55, 1
      %p59 = scmp.eq.s32.totalorder %s21, 1
      %p60 = scmp.ne.s32.totalorder %s55, %s57
      %p61 = scmp.eq.s32.totalorder %s21, 0
      %p62 = por %p60, %p61
      %p63 = scmp.ne.s32.totalorder %s55, %s57
      %p64 = scmp.eq.s32.totalorder %s26, 1
      %p65 = por %p63, %p64
      %p66 = scmp.ne.s32.totalorder %s57, %s58
      %p67 = scmp.eq.s32.totalorder %s26, 0
      %p68 = por %p66, %p67
      %p69 = scmp.ne.s32.totalorder %s57, %s58
      %p70 = scmp.eq.s32.totalorder %s27, 1
      %p71 = por %p69, %p70
      %p73 = scmp.ne.s32.totalorder %s58, %s72
      %p74 = scmp.eq.s32.totalorder %s27, 0
      %p75 = por %p73, %p74
      %s77 = sadd.s32 %s76, 1
      %p80 = scmp.eq.s32.totalorder %s21, 1
      %p81 = scmp.ne.s32.totalorder %s76, %s78
      %p82 = scmp.eq.s32.totalorder %s21, 0
      %p83 = por %p81, %p82
      %p84 = scmp.ne.s32.totalorder %s76, %s78
      %p85 = scmp.eq.s32.totalorder %s26, 1
      %p86 = por %p84, %p85
      %p87 = scmp.ne.s32.totalorder %s78, %s79
      %p88 = scmp.eq.s32.totalorder %s26, 0
      %p89 = por %p87, %p88
      %p90 = scmp.ne.s32.totalorder %s78, %s79
      %p91 = scmp.eq.s32.totalorder %s27, 1
      %p92 = por %p90, %p91
      %p94 = scmp.ne.s32.totalorder %s79, %s93
      %p95 = scmp.eq.s32.totalorder %s27, 0
      %p96 = por %p94, %p95
      %s97 = ssub.s32 %s21, %s28
      %p98 = scmp.eq.s32.totalorder %s97, 0
      %s100 = sadd.s32 %s99, 1
      %s101 = scalar_select %p98, %s99, %s100
      %p104 = pneg %p98
      %p105 = scmp.eq.s32.totalorder %s21, 1
      %p106 = por %p104, %p105
      %p107 = scmp.ne.s32.totalorder %s99, %s102
      %p108 = scmp.eq.s32.totalorder %s21, 0
      %p109 = por %p107, %p108
      %p110 = scmp.ne.s32.totalorder %s99, %s102
      %p111 = scmp.eq.s32.totalorder %s26, 1
      %p112 = por %p110, %p111
      %p113 = scmp.ne.s32.totalorder %s102, %s103
      %p114 = scmp.eq.s32.totalorder %s26, 0
      %p115 = por %p113, %p114
      %p116 = scmp.ne.s32.totalorder %s102, %s103
      %p117 = scmp.eq.s32.totalorder %s27, 1
      %p118 = por %p116, %p117
      %p120 = scmp.ne.s32.totalorder %s103, %s119
      %p121 = scmp.eq.s32.totalorder %s27, 0
      %p122 = por %p120, %p121
      %s123 = ssub.s32 %s21, %s28
      %p124 = scmp.eq.s32.totalorder %s123, 0
      %s126 = sadd.s32 %s125, 1
      %s127 = scalar_select %p124, %s125, %s126
      %p130 = pneg %p124
      %p131 = scmp.eq.s32.totalorder %s21, 1
      %p132 = por %p130, %p131
      %p133 = scmp.ne.s32.totalorder %s125, %s128
      %p134 = scmp.eq.s32.totalorder %s21, 0
      %p135 = por %p133, %p134
      %p136 = scmp.ne.s32.totalorder %s125, %s128
      %p137 = scmp.eq.s32.totalorder %s26, 1
      %p138 = por %p136, %p137
      %p139 = scmp.ne.s32.totalorder %s128, %s129
      %p140 = scmp.eq.s32.totalorder %s26, 0
      %p141 = por %p139, %p140
      %p142 = scmp.ne.s32.totalorder %s128, %s129
      %p143 = scmp.eq.s32.totalorder %s27, 1
      %p144 = por %p142, %p143
      %p146 = scmp.ne.s32.totalorder %s129, %s145
      %p147 = scmp.eq.s32.totalorder %s27, 0
      %p148 = por %p146, %p147
      %p149 = scmp.le.s32.totalorder 1, %s21
      %p150 = scmp.lt.s32.totalorder %s21, 3
      %p151 = pnand %p149, %p150
      %p152 = pneg %p151
      // Predicated region
      $region9: #{tpu_custom_call.1} parent=5 // pred_check
        _
      $region10: #{tpu_custom_call.1} parent=5 // pred_check_branch
        %154 = sbr.rel (%p151) target = $region12
      $region11: #{tpu_custom_call.1} parent=5 // pred_region
        %s155 = ssub.s32 %s21, 1
        // Predicated region
        $region13: #{tpu_custom_call.1} parent=11 // pred_check
          %p156 = pneg %p68
        $region14: #{tpu_custom_call.1} parent=11 // pred_check_branch
          %158 = sbr.rel (%p156) target = $region16
        $region15: #{tpu_custom_call.1} parent=11 // pred_region
          %s160 = ssub.s32 4096, 4096
          %161 = vsyncadd [#allocation6], %s160
          %s162 = sshll.u32 [#allocation5], 4
          %s163 = int_to_ptr.vmem [resolvable:$true] %s162
          %168 = dma.hbm_to_vmem [thread:$0]  %s1, 4096, %s163, [#allocation6], 256, 256, 16
        $region16: #{tpu_custom_call.1} parent=11 // pred_fallthru
          _
        // Predicated region
        $region17: #{tpu_custom_call.1} parent=11 // pred_check
          %p169 = pneg %p89
        $region18: #{tpu_custom_call.1} parent=11 // pred_check_branch
          %171 = sbr.rel (%p169) target = $region20
        $region19: #{tpu_custom_call.1} parent=11 // pred_region
          _
        $region20: #{tpu_custom_call.1} parent=11 // pred_fallthru
          _
      $region12: #{tpu_custom_call.1} parent=5 // pred_fallthru
        _
      %p172 = scmp.lt.s32.totalorder %s21, 2
      // Predicated region
      $region21: #{tpu_custom_call.1} parent=5 // pred_check
        %p173 = pneg %p172
      $region22: #{tpu_custom_call.1} parent=5 // pred_check_branch
        %175 = sbr.rel (%p173) target = $region24
      $region23: #{tpu_custom_call.1} parent=5 // pred_region
        // Predicated region
        $region25: #{tpu_custom_call.1} parent=23 // pred_check
          %p176 = pneg %p41
        $region26: #{tpu_custom_call.1} parent=23 // pred_check_branch
          %178 = sbr.rel (%p176) target = $region28
        $region27: #{tpu_custom_call.1} parent=23 // pred_region
          %s179 = sand.u32 %s31, 1
          %s180 = scalar_lea.sflag [#allocation3], %s179
          %s181 = sand.u32 %s31, 1
          %s182 = smul.addr %s181, 64
          %s183 = scalar_lea.vmem [#allocation2], %s182
          %s185 = ssub.s32 1024, 1024
          %186 = vsyncadd %s180, %s185
          %s187 = smul.addr %s21, 8
          %s188 = smul.addr %s187, 128
          %s189 = scalar_lea.hbm %s0, %s188
          %s190 = sshll.u32 %s183, 4
          %s191 = int_to_ptr.vmem [resolvable:$true] %s190
          %196 = dma.hbm_to_vmem [thread:$0]  %s189, 1024, %s191, %s180, 128, 128, 8
        $region28: #{tpu_custom_call.1} parent=23 // pred_fallthru
          _
      $region24: #{tpu_custom_call.1} parent=5 // pred_fallthru
        _
      %p197 = scmp.le.s32.totalorder 1, %s21
      %p198 = scmp.lt.s32.totalorder %s21, 3
      %p199 = pnand %p197, %p198
      %p200 = pneg %p199
      // Predicated region
      $region29: #{tpu_custom_call.1} parent=5 // pred_check
        _
      $region30: #{tpu_custom_call.1} parent=5 // pred_check_branch
        %202 = sbr.rel (%p199) target = $region32
      $region31: #{tpu_custom_call.1} parent=5 // pred_region
        %s203 = ssub.s32 %s21, 1
        %s204 = sand.u32 %s34, 1
        %s205 = scalar_lea.sflag [#allocation3], %s204
        %s206 = sand.u32 %s34, 1
        %s207 = smul.addr %s206, 64
        %s208 = scalar_lea.vmem [#allocation2], %s207
        // Predicated region
        $region33: #{tpu_custom_call.1} parent=31 // pred_check
          %p209 = pneg %p47
        $region34: #{tpu_custom_call.1} parent=31 // pred_check_branch
          %211 = sbr.rel (%p209) target = $region36
        $region35: #{tpu_custom_call.1} parent=31 // pred_region
          %212 = dma.done %s205, 1024
        $region36: #{tpu_custom_call.1} parent=31 // pred_fallthru
          _
        // Predicated region
        $region37: #{tpu_custom_call.1} parent=31 // pred_check
          %p213 = pneg %p68
        $region38: #{tpu_custom_call.1} parent=31 // pred_check_branch
          %215 = sbr.rel (%p213) target = $region40
        $region39: #{tpu_custom_call.1} parent=31 // pred_region
          %216 = dma.done [#allocation6], 4096
        $region40: #{tpu_custom_call.1} parent=31 // pred_fallthru
          _
        %s217 = sand.u32 %s34, 1
        %s218 = scalar_lea.sflag [#allocation3], %s217
        %s219 = sand.u32 %s34, 1
        %s220 = smul.addr %s219, 64
        %s221 = scalar_lea.vmem [#allocation2], %s220
        %p222 = pneg %p47
        %p223 = pneg %p44
        %p224 = pneg %p68
        %p225 = pneg %p65
        %p226 = pneg %p89
        %p227 = pneg %p86
        %p228 = pneg %p115
        %p229 = pneg %p112
        %s230 = sand.u32 %s102, 1
        %s231 = scalar_lea.sflag [#allocation4], %s230
        %s232 = sand.u32 %s102, 1
        %s233 = smul.addr %s232, 64
        %s234 = scalar_lea.vmem [#allocation7], %s233
        %p235 = pneg %p141
        %p236 = pneg %p138
        %s237 = sand.u32 %s128, 1
        %s238 = scalar_lea.sflag [#allocation9], %s237
        %s239 = sand.u32 %s128, 1
        %s240 = smul.addr %s239, 128
        %s241 = scalar_lea.vmem [#allocation8], %s240
        %v242 = vld [vmem:[%s208] sm:$0xff]
        %v243 = vld [vmem:[%s208 + $0x8] sm:$0xff]
        %v244 = vld [vmem:[%s208 + $0x10] sm:$0xff]
        %v245 = vld [vmem:[%s208 + $0x18] sm:$0xff]
        %v246 = vld [vmem:[%s208 + $0x20] sm:$0xff]
        %v247 = vld [vmem:[%s208 + $0x28] sm:$0xff]
        %v248 = vld [vmem:[%s208 + $0x30] sm:$0xff]
        %v249 = vld [vmem:[%s208 + $0x38] sm:$0xff]
        %v250 = vld [vmem:[#allocation5] sm:$0xff]
        %v251 = vld [vmem:[#allocation5 + $0x8] sm:$0xff]
        %v252 = vld [vmem:[#allocation5 + $0x10] sm:$0xff]
        %v253 = vld [vmem:[#allocation5 + $0x18] sm:$0xff]
        %v254 = vld [vmem:[#allocation5 + $0x20] sm:$0xff]
        %v255 = vld [vmem:[#allocation5 + $0x28] sm:$0xff]
        %v256 = vld [vmem:[#allocation5 + $0x30] sm:$0xff]
        %v257 = vld [vmem:[#allocation5 + $0x38] sm:$0xff]
        %v258 = vld [vmem:[#allocation5 + $0x40] sm:$0xff]
        %v259 = vld [vmem:[#allocation5 + $0x48] sm:$0xff]
        %v260 = vld [vmem:[#allocation5 + $0x50] sm:$0xff]
        %v261 = vld [vmem:[#allocation5 + $0x58] sm:$0xff]
        %v262 = vld [vmem:[#allocation5 + $0x60] sm:$0xff]
        %v263 = vld [vmem:[#allocation5 + $0x68] sm:$0xff]
        %v264 = vld [vmem:[#allocation5 + $0x70] sm:$0xff]
        %v265 = vld [vmem:[#allocation5 + $0x78] sm:$0xff]
        %v266 = vld [vmem:[#allocation5 + $0x80] sm:$0xff]
        %v267 = vld [vmem:[#allocation5 + $0x88] sm:$0xff]
        %v268 = vld [vmem:[#allocation5 + $0x90] sm:$0xff]
        %v269 = vld [vmem:[#allocation5 + $0x98] sm:$0xff]
        %v270 = vld [vmem:[#allocation5 + $0xa0] sm:$0xff]
        %v271 = vld [vmem:[#allocation5 + $0xa8] sm:$0xff]
        %v272 = vld [vmem:[#allocation5 + $0xb0] sm:$0xff]
        %v273 = vld [vmem:[#allocation5 + $0xb8] sm:$0xff]
        %v274 = vld [vmem:[#allocation5 + $0xc0] sm:$0xff]
        %v275 = vld [vmem:[#allocation5 + $0xc8] sm:$0xff]
        %v276 = vld [vmem:[#allocation5 + $0xd0] sm:$0xff]
        %v277 = vld [vmem:[#allocation5 + $0xd8] sm:$0xff]
        %v278 = vld [vmem:[#allocation5 + $0xe0] sm:$0xff]
        %v279 = vld [vmem:[#allocation5 + $0xe8] sm:$0xff]
        %v280 = vld [vmem:[#allocation5 + $0xf0] sm:$0xff]
        %v281 = vld [vmem:[#allocation5 + $0xf8] sm:$0xff]
        %v282 = vld [vmem:[%s2] sm:$0x3]
        %v284 = vlaneseq
        %v285 = vshrl.u32 %v284, 7
        %v286 = vsub.s32 0, %v285
        %v287 = vrot.slane %v282, %v286
        %v288 = vlaneseq
        %v289 = vshrl.u32 %v288, 7
        %v290 = vsub.s32 1, %v289
        %v291 = vrot.slane %v282, %v290
        %294 = vmatprep.subr.mxu0 %v281
        %295 = vmatpush1.msra.mxu0 %v280
        %296 = vmatprep.subr.mxu0 %v279
        %297 = vmatpush1.msra.mxu0 %v278
        %298 = vmatprep.subr.mxu0 %v277
        %299 = vmatpush1.msra.mxu0 %v276
        %300 = vmatprep.subr.mxu0 %v275
        %301 = vmatpush1.msra.mxu0 %v274
        %302 = vmatprep.subr.mxu0 %v273
        %303 = vmatpush1.msra.mxu0 %v272
        %304 = vmatprep.subr.mxu0 %v271
        %305 = vmatpush1.msra.mxu0 %v270
        %306 = vmatprep.subr.mxu0 %v269
        %307 = vmatpush1.msra.mxu0 %v268
        %308 = vmatprep.subr.mxu0 %v267
        %309 = vmatpush1.msra.mxu0 %v266
        %310 = vmatprep.subr.mxu0 %v265
        %311 = vmatpush1.msra.mxu0 %v264
        %312 = vmatprep.subr.mxu0 %v263
        %313 = vmatpush1.msra.mxu0 %v262
        %314 = vmatprep.subr.mxu0 %v261
        %315 = vmatpush1.msra.mxu0 %v260
        %316 = vmatprep.subr.mxu0 %v259
        %317 = vmatpush1.msra.mxu0 %v258
        %318 = vmatprep.subr.mxu0 %v257
        %319 = vmatpush1.msra.mxu0 %v256
        %320 = vmatprep.subr.mxu0 %v255
        %321 = vmatpush1.msra.mxu0 %v254
        %322 = vmatprep.subr.mxu0 %v253
        %323 = vmatpush1.msra.mxu0 %v252
        %324 = vmatprep.subr.mxu0 %v251
        %325 = vmatpush1.msra.mxu0 %v250
        %326 = vmatprep.subr.mxu0 0.0
        %327 = vmatpush2.msra.mxu0 0.0
        %328 = vmatprep.subr.mxu0 0.0
        %329 = vmatpush2.msra.mxu0 0.0
        %330 = vmatprep.subr.mxu0 0.0
        %331 = vmatpush2.msra.mxu0 0.0
        %332 = vmatprep.subr.mxu0 0.0
        %333 = vmatpush2.msra.mxu0 0.0
        %334 = vmatprep.subr.mxu0 0.0
        %335 = vmatpush2.msra.mxu0 0.0
        %336 = vmatprep.subr.mxu0 0.0
        %337 = vmatpush2.msra.mxu0 0.0
        %338 = vmatprep.subr.mxu0 0.0
        %339 = vmatpush2.msra.mxu0 0.0
        %340 = vmatprep.subr.mxu0 0.0
        %341 = vmatpush2.msra.mxu0 0.0
        %342 = vmatprep.subr.mxu0 0.0
        %343 = vmatpush2.msra.mxu0 0.0
        %344 = vmatprep.subr.mxu0 0.0
        %345 = vmatpush2.msra.mxu0 0.0
        %346 = vmatprep.subr.mxu0 0.0
        %347 = vmatpush2.msra.mxu0 0.0
        %348 = vmatprep.subr.mxu0 0.0
        %349 = vmatpush2.msra.mxu0 0.0
        %350 = vmatprep.subr.mxu0 0.0
        %351 = vmatpush2.msra.mxu0 0.0
        %352 = vmatprep.subr.mxu0 0.0
        %353 = vmatpush2.msra.mxu0 0.0
        %354 = vmatprep.subr.mxu0 0.0
        %355 = vmatpush2.msra.mxu0 0.0
        %356 = vmatprep.subr.mxu0 0.0
        %357 = vmatpush2.msra.mxu0 0.0
        %358 = vmatprep.mubr.f32.mxu0 0.0
        %359 = vmatmul.mubr.f32.gmra.mxu0 %v242
        %v360 = vpop.f32.mrf.mxu0
        %v361 = vadd.f32 %v287, %v360
        %v362 = vpop.f32.mrf.mxu0
        %v363 = vadd.f32 %v291, %v362
        %364 = vmatprep.mubr.f32.mxu0 0.0
        %365 = vmatmul.mubr.f32.gmra.mxu0 %v243
        %v366 = vpop.f32.mrf.mxu0
        %v367 = vadd.f32 %v287, %v366
        %v368 = vpop.f32.mrf.mxu0
        %v369 = vadd.f32 %v291, %v368
        %370 = vmatprep.mubr.f32.mxu0 0.0
        %371 = vmatmul.mubr.f32.gmra.mxu0 %v244
        %v372 = vpop.f32.mrf.mxu0
        %v373 = vadd.f32 %v287, %v372
        %v374 = vpop.f32.mrf.mxu0
        %v375 = vadd.f32 %v291, %v374
        %376 = vmatprep.mubr.f32.mxu0 0.0
        %377 = vmatmul.mubr.f32.gmra.mxu0 %v245
        %v378 = vpop.f32.mrf.mxu0
        %v379 = vadd.f32 %v287, %v378
        %v380 = vpop.f32.mrf.mxu0
        %v381 = vadd.f32 %v291, %v380
        %382 = vmatprep.mubr.f32.mxu0 0.0
        %383 = vmatmul.mubr.f32.gmra.mxu0 %v246
        %v384 = vpop.f32.mrf.mxu0
        %v385 = vadd.f32 %v287, %v384
        %v386 = vpop.f32.mrf.mxu0
        %v387 = vadd.f32 %v291, %v386
        %388 = vmatprep.mubr.f32.mxu0 0.0
        %389 = vmatmul.mubr.f32.gmra.mxu0 %v247
        %v390 = vpop.f32.mrf.mxu0
        %v391 = vadd.f32 %v287, %v390
        %v392 = vpop.f32.mrf.mxu0
        %v393 = vadd.f32 %v291, %v392
        %394 = vmatprep.mubr.f32.mxu0 0.0
        %395 = vmatmul.mubr.f32.gmra.mxu0 %v248
        %v396 = vpop.f32.mrf.mxu0
        %v397 = vadd.f32 %v287, %v396
        %v398 = vpop.f32.mrf.mxu0
        %v399 = vadd.f32 %v291, %v398
        %400 = vmatprep.mubr.f32.mxu0 0.0
        %401 = vmatmul.mubr.f32.gmra.mxu0 %v249
        %v402 = vpop.f32.mrf.mxu0
        %v403 = vadd.f32 %v287, %v402
        %v404 = vpop.f32.mrf.mxu0
        %v405 = vadd.f32 %v291, %v404
        %406 = vdwg.mxu0
        %407 = vst [vmem:[%s234] sm:$0xff] %v361
        %408 = vst [vmem:[%s234 + $0x8] sm:$0xff] %v367
        %409 = vst [vmem:[%s234 + $0x10] sm:$0xff] %v373
        %410 = vst [vmem:[%s234 + $0x18] sm:$0xff] %v379
        %411 = vst [vmem:[%s234 + $0x20] sm:$0xff] %v385
        %412 = vst [vmem:[%s234 + $0x28] sm:$0xff] %v391
        %413 = vst [vmem:[%s234 + $0x30] sm:$0xff] %v397
        %414 = vst [vmem:[%s234 + $0x38] sm:$0xff] %v403
        %415 = vst [vmem:[%s241] sm:$0xff] %v363
        %416 = vst [vmem:[%s241 + $0x10] sm:$0xff] %v369
        %417 = vst [vmem:[%s241 + $0x20] sm:$0xff] %v375
        %418 = vst [vmem:[%s241 + $0x30] sm:$0xff] %v381
        %419 = vst [vmem:[%s241 + $0x40] sm:$0xff] %v387
        %420 = vst [vmem:[%s241 + $0x50] sm:$0xff] %v393
        %421 = vst [vmem:[%s241 + $0x60] sm:$0xff] %v399
        %422 = vst [vmem:[%s241 + $0x70] sm:$0xff] %v405
        %v423 = vmul.f32 %v363, %v363
        %v424 = vmul.f32 %v369, %v369
        %v425 = vmul.f32 %v375, %v375
        %v426 = vmul.f32 %v381, %v381
        %v427 = vmul.f32 %v387, %v387
        %v428 = vmul.f32 %v393, %v393
        %v429 = vmul.f32 %v399, %v399
        %v430 = vmul.f32 %v405, %v405
        %431 = vst [vmem:[%s241 + $0x8] sm:$0xff] %v423
        %432 = vst [vmem:[%s241 + $0x18] sm:$0xff] %v424
        %433 = vst [vmem:[%s241 + $0x28] sm:$0xff] %v425
        %434 = vst [vmem:[%s241 + $0x38] sm:$0xff] %v426
        %435 = vst [vmem:[%s241 + $0x48] sm:$0xff] %v427
        %436 = vst [vmem:[%s241 + $0x58] sm:$0xff] %v428
        %437 = vst [vmem:[%s241 + $0x68] sm:$0xff] %v429
        %438 = vst [vmem:[%s241 + $0x78] sm:$0xff] %v430
        %s439 = sand.u32 %s102, 1
        %s440 = scalar_lea.sflag [#allocation4], %s439
        %s441 = sand.u32 %s102, 1
        %s442 = smul.addr %s441, 64
        %s443 = scalar_lea.vmem [#allocation7], %s442
        %s444 = sand.u32 %s128, 1
        %s445 = scalar_lea.sflag [#allocation9], %s444
        %s446 = sand.u32 %s128, 1
        %s447 = smul.addr %s446, 128
        %s448 = scalar_lea.vmem [#allocation8], %s447
        // Predicated region
        $region41: #{tpu_custom_call.1} parent=31 // pred_check
          %p449 = pneg %p112
        $region42: #{tpu_custom_call.1} parent=31 // pred_check_branch
          %451 = sbr.rel (%p449) target = $region44
        $region43: #{tpu_custom_call.1} parent=31 // pred_region
          %s453 = ssub.s32 1024, 1024
          %454 = vsyncadd %s440, %s453
          %s455 = smul.addr %s26, 8
          %s456 = smul.addr %s455, 128
          %s457 = scalar_lea.hbm %s3, %s456
          %s458 = sshll.u32 %s443, 4
          %s459 = int_to_ptr.vmem [resolvable:$true] %s458
          %464 = dma.vmem_to_hbm [thread:$0]  %s459, 1024, %s457, %s440, 128, 128, 8
        $region44: #{tpu_custom_call.1} parent=31 // pred_fallthru
          _
        // Predicated region
        $region45: #{tpu_custom_call.1} parent=31 // pred_check
          %p465 = pneg %p138
        $region46: #{tpu_custom_call.1} parent=31 // pred_check_branch
          %467 = sbr.rel (%p465) target = $region48
        $region47: #{tpu_custom_call.1} parent=31 // pred_region
          %s469 = ssub.s32 2048, 2048
          %470 = vsyncadd %s445, %s469
          %s471 = smul.addr %s26, 16
          %s472 = smul.addr %s471, 128
          %s473 = scalar_lea.hbm %s4, %s472
          %s474 = sshll.u32 %s448, 4
          %s475 = int_to_ptr.vmem [resolvable:$true] %s474
          %480 = dma.vmem_to_hbm [thread:$0]  %s475, 2048, %s473, %s445, 256, 256, 16
        $region48: #{tpu_custom_call.1} parent=31 // pred_fallthru
          _
      $region32: #{tpu_custom_call.1} parent=5 // pred_fallthru
        _
      %p481 = scmp.le.s32.totalorder 2, %s21
      // Predicated region
      $region49: #{tpu_custom_call.1} parent=5 // pred_check
        %p482 = pneg %p481
      $region50: #{tpu_custom_call.1} parent=5 // pred_check_branch
        %484 = sbr.rel (%p482) target = $region52
      $region51: #{tpu_custom_call.1} parent=5 // pred_region
        %s485 = ssub.s32 %s21, 2
        // Predicated region
        $region53: #{tpu_custom_call.1} parent=51 // pred_check
          %p486 = pneg %p118
        $region54: #{tpu_custom_call.1} parent=51 // pred_check_branch
          %488 = sbr.rel (%p486) target = $region56
        $region55: #{tpu_custom_call.1} parent=51 // pred_region
          %s489 = sand.u32 %s103, 1
          %s490 = scalar_lea.sflag [#allocation4], %s489
          %s491 = sand.u32 %s103, 1
          %s492 = smul.addr %s491, 64
          %s493 = scalar_lea.vmem [#allocation7], %s492
          %494 = dma.done %s490, 1024
        $region56: #{tpu_custom_call.1} parent=51 // pred_fallthru
          _
        // Predicated region
        $region57: #{tpu_custom_call.1} parent=51 // pred_check
          %p495 = pneg %p144
        $region58: #{tpu_custom_call.1} parent=51 // pred_check_branch
          %497 = sbr.rel (%p495) target = $region60
        $region59: #{tpu_custom_call.1} parent=51 // pred_region
          %s498 = sand.u32 %s129, 1
          %s499 = scalar_lea.sflag [#allocation9], %s498
          %s500 = sand.u32 %s129, 1
          %s501 = smul.addr %s500, 128
          %s502 = scalar_lea.vmem [#allocation8], %s501
          %503 = dma.done %s499, 2048
        $region60: #{tpu_custom_call.1} parent=51 // pred_fallthru
          _
      $region52: #{tpu_custom_call.1} parent=5 // pred_fallthru
        _
    $region6: #{tpu_custom_call.1} parent=1 // loop_footer
      %s25 = sadd.s32 1, %s21
    $region7: #{tpu_custom_call.1} parent=1 // loop_footer_branch
      %20 = sbr.rel target = $region3
    $region8: #{tpu_custom_call.1} parent=1 // loop_exit
      _
    %504 = vsyncpa [#allocation3], 1
    %s505 = scalar_lea.sflag [#allocation3], 1
    %506 = vsyncpa %s505, 1
    %507 = vsyncpa [#allocation6], 1
    %508 = vsyncpa [#allocation4], 1
    %s509 = scalar_lea.sflag [#allocation4], 1
    %510 = vsyncpa %s509, 1
    %511 = vsyncpa [#allocation9], 1
    %s512 = scalar_lea.sflag [#allocation9], 1
    %513 = vsyncpa %s512, 1

</llo_original>
